<compile_context>
chip_gen: v6e
topology: v6e:2x2x1
jax: 0.10.0
libtpu: 0.0.40
codegen_flags: <defaults>
</compile_context>

<pallas_src>
import functools

import jax
import jax.numpy as jnp
from jax import lax
from jax.experimental import pallas as pl
from jax.experimental.pallas import tpu as pltpu


def _encoder_kernel(x_ref, w_ref, b_ref, mean_ref, logvar_ref):
    # x_ref:    (TB, F)
    # w_ref:    (2L, F)   -- PyTorch (out, in) layout, resident in VMEM
    # b_ref:    (1, 2L)
    # mean_ref, logvar_ref: (TB, L)
    x = x_ref[...]
    w = w_ref[...]
    b = b_ref[...]
    # y = x @ W^T + b, accumulated in f32 on the MXU; contraction over the
    # shared feature axis (x axis 1 with w axis 1) avoids any transpose.
    y = lax.dot_general(
        x, w,
        dimension_numbers=(((1,), (1,)), ((), ())),
        preferred_element_type=jnp.float32,
    ) + b
    latent = mean_ref.shape[-1]
    mean_ref[...] = y[:, :latent].astype(mean_ref.dtype)
    logvar_ref[...] = y[:, latent:].astype(logvar_ref.dtype)


def _round_up(x, m):
    return ((x + m - 1) // m) * m


@functools.partial(jax.jit, static_argnames=("latent_dim", "block_b"))
def vanilla_encoder_layer(feature, weight, bias, latent_dim, block_b=1024):
    """feature: (B, feature_dim); weight: (2*latent_dim, feature_dim) (PyTorch
    layout); bias: (2*latent_dim,).  Returns (mean, logvar), each (B, latent_dim)."""
    B, F = feature.shape
    out_dim = weight.shape[0]                  # = 2 * latent_dim
    assert out_dim == 2 * latent_dim
    assert weight.shape == (out_dim, F)
    assert bias.shape == (out_dim,)

    # Batch tile: multiple of 8 (f32 sublane), capped by the requested block
    # size; pad the batch so it divides evenly (padding stripped at the end).
    tb = min(block_b, _round_up(B, 8))
    tb = _round_up(tb, 8)
    b_pad = _round_up(B, tb)
    if b_pad != B:
        feature = jnp.pad(feature, ((0, b_pad - B), (0, 0)))

    b2d = bias.reshape(1, out_dim)             # broadcastable row

    grid = (b_pad // tb,)
    grid_spec = pl.GridSpec(
        grid=grid,
        in_specs=[
            pl.BlockSpec((tb, F), lambda i: (i, 0)),          # x: batch-tiled
            pl.BlockSpec((out_dim, F), lambda i: (0, 0)),     # W: VMEM-resident
            pl.BlockSpec((1, out_dim), lambda i: (0, 0)),     # b: VMEM-resident
        ],
        out_specs=[
            pl.BlockSpec((tb, latent_dim), lambda i: (i, 0)),  # mean
            pl.BlockSpec((tb, latent_dim), lambda i: (i, 0)),  # logvar
        ],
    )

    cost = pl.CostEstimate(
        flops=2 * b_pad * F * out_dim,
        transcendentals=0,
        bytes_accessed=4 * (b_pad * F + F * out_dim + out_dim
                            + b_pad * out_dim),
    )

    mean, logvar = pl.pallas_call(
        _encoder_kernel,
        out_shape=(
            jax.ShapeDtypeStruct((b_pad, latent_dim), feature.dtype),
            jax.ShapeDtypeStruct((b_pad, latent_dim), feature.dtype),
        ),
        grid_spec=grid_spec,
        compiler_params=pltpu.CompilerParams(
            dimension_semantics=("parallel",)),
        cost_estimate=cost,
    )(feature, weight, b2d)

    if b_pad != B:
        mean = mean[:B]
        logvar = logvar[:B]
    return mean, logvar


if __name__ == "__main__":
    # Mirror the module's __init__: args.latent_dim = 8 -> latent_dim = 16,
    # feature_dim = 32, so the linear layer is Linear(32, 2*16) = Linear(32, 32).
    args_latent_dim = 8
    latent_dim = int(args_latent_dim * 2)       # 16
    feature_dim = 32
    out_dim = 2 * latent_dim                    # 32
    batch = 128

    key = jax.random.PRNGKey(0)
    k_x, k_w, k_b = jax.random.split(key, 3)

    # PyTorch default Linear init: U(-1/sqrt(fan_in), 1/sqrt(fan_in))
    bound = 1.0 / (feature_dim ** 0.5)
    weight = jax.random.uniform(k_w, (out_dim, feature_dim),
                                minval=-bound, maxval=bound, dtype=jnp.float32)
    bias = jax.random.uniform(k_b, (out_dim,),
                              minval=-bound, maxval=bound, dtype=jnp.float32)
    feature = jax.random.normal(k_x, (batch, feature_dim), dtype=jnp.float32)

    # Small block_b so the demo exercises multiple grid steps (128 / 64 = 2).
    mean, logvar = vanilla_encoder_layer(feature, weight, bias, latent_dim,
                                         block_b=64)
    jax.block_until_ready((mean, logvar))

    # Correctness check against a plain-JAX reference of the PyTorch forward.
    y_ref = feature @ weight.T + bias
    mean_ref, logvar_ref = y_ref[:, :latent_dim], y_ref[:, latent_dim:]
    assert mean.shape == (batch, latent_dim)
    assert logvar.shape == (batch, latent_dim)
    assert jnp.allclose(mean, mean_ref, atol=1e-5)
    assert jnp.allclose(logvar, logvar_ref, atol=1e-5)

    print("KERNEL_OK")
</pallas_src>

<mosaic_0001>
module attributes {stable_mosaic.version = 11 : i64} {
  func.func @_encoder_kernel(%arg0: i32, %arg1: memref<64x32xf32, #tpu.memory_space<vmem>>, %arg2: memref<32x32xf32, #tpu.memory_space<vmem>>, %arg3: memref<1x32xf32, #tpu.memory_space<vmem>>, %arg4: memref<64x16xf32, #tpu.memory_space<vmem>>, %arg5: memref<64x16xf32, #tpu.memory_space<vmem>>) attributes {dimension_semantics = [#tpu.dimension_semantics<parallel>], iteration_bounds = array<i64: 2>, scalar_prefetch = 0 : i64, scratch_operands = 0 : i64, tpu.core_type = #tpu.core_type<tc>, window_params = [{transform_indices = @transform_0, window_bounds = array<i64: 64, 32>}, {pipeline_mode = #tpu.pipeline_mode<synchronous>, transform_indices = @transform_1, window_bounds = array<i64: 32, 32>}, {pipeline_mode = #tpu.pipeline_mode<synchronous>, transform_indices = @transform_2, window_bounds = array<i64: 1, 32>}, {transform_indices = @transform_3, window_bounds = array<i64: 64, 16>}, {transform_indices = @transform_4, window_bounds = array<i64: 64, 16>}]} {
    %c0 = arith.constant 0 : index
    %c0_0 = arith.constant 0 : index
    %0 = vector.load %arg1[%c0, %c0_0] : memref<64x32xf32, #tpu.memory_space<vmem>>, vector<64x32xf32>
    %c0_1 = arith.constant 0 : index
    %c0_2 = arith.constant 0 : index
    %1 = vector.load %arg2[%c0_1, %c0_2] : memref<32x32xf32, #tpu.memory_space<vmem>>, vector<32x32xf32>
    %c0_3 = arith.constant 0 : index
    %c0_4 = arith.constant 0 : index
    %2 = vector.load %arg3[%c0_3, %c0_4] : memref<1x32xf32, #tpu.memory_space<vmem>>, vector<1x32xf32>
    %cst = arith.constant dense<0.000000e+00> : vector<64x32xf32>
    %3 = tpu.matmul %0, %1, %cst {dimension_numbers = #tpu.dot_dimension_numbers<[1], [1], [0], [0], [0, 0, 1, 0], [], []>} : vector<64x32xf32>, vector<32x32xf32>, vector<64x32xf32> -> vector<64x32xf32>
    %4 = vector.broadcast %2 : vector<1x32xf32> to vector<64x32xf32>
    %5 = arith.addf %3, %4 : vector<64x32xf32>
    %6 = vector.extract_strided_slice %5 {offsets = [0, 0], sizes = [64, 16], strides = [1, 1]} : vector<64x32xf32> to vector<64x16xf32>
    %c0_5 = arith.constant 0 : index
    %c0_6 = arith.constant 0 : index
    %7 = vector.load %arg4[%c0_5, %c0_6] : memref<64x16xf32, #tpu.memory_space<vmem>>, vector<64x16xf32>
    tpu.vector_store %arg4[%c0_5, %c0_6], %6 {strides = array<i32>} : memref<64x16xf32, #tpu.memory_space<vmem>>, vector<64x16xf32>,
    %8 = vector.extract_strided_slice %5 {offsets = [0, 16], sizes = [64, 16], strides = [1, 1]} : vector<64x32xf32> to vector<64x16xf32>
    %c0_7 = arith.constant 0 : index
    %c0_8 = arith.constant 0 : index
    %9 = vector.load %arg5[%c0_7, %c0_8] : memref<64x16xf32, #tpu.memory_space<vmem>>, vector<64x16xf32>
    tpu.vector_store %arg5[%c0_7, %c0_8], %8 {strides = array<i32>} : memref<64x16xf32, #tpu.memory_space<vmem>>, vector<64x16xf32>,
    return
  }
  func.func @transform_0(%arg0: i32) -> (i32, i32) {
    %c0_i32 = arith.constant 0 : i32
    %c0_i32_0 = arith.constant 0 : i32
    return %arg0, %c0_i32 : i32, i32
  }
  func.func @transform_1(%arg0: i32) -> (i32, i32) {
    %c0_i32 = arith.constant 0 : i32
    %c0_i32_0 = arith.constant 0 : i32
    %c0_i32_1 = arith.constant 0 : i32
    return %c0_i32, %c0_i32_0 : i32, i32
  }
  func.func @transform_2(%arg0: i32) -> (i32, i32) {
    %c0_i32 = arith.constant 0 : i32
    %c0_i32_0 = arith.constant 0 : i32
    %c0_i32_1 = arith.constant 0 : i32
    return %c0_i32, %c0_i32_0 : i32, i32
  }
  func.func @transform_3(%arg0: i32) -> (i32, i32) {
    %c0_i32 = arith.constant 0 : i32
    %c0_i32_0 = arith.constant 0 : i32
    return %arg0, %c0_i32 : i32, i32
  }
  func.func @transform_4(%arg0: i32) -> (i32, i32) {
    %c0_i32 = arith.constant 0 : i32
    %c0_i32_0 = arith.constant 0 : i32
    return %arg0, %c0_i32 : i32, i32
  }
}

</mosaic_0001>

<llo_original>
// kernel: vanilla_encoder_layer.1
$region0: #{vanilla_encoder_layer.1}
  #allocation0 [shape = 'u32[]', space=smem, size = 0x4, offset = 0x4, fixed_abs, tag = 'smem constant byte address 0x4 - core index']
  #allocation1 [shape = 'u32[144,128]{1,0:T(1,128)}', space=vmem, size = 0x12000, scoped, tag = 'internal scratch']
  %s0 = inlined_call_operand.vmem [shape: f32[128,32], index: 0, kind: input, shape index: {}]
  %s1 = inlined_call_operand.vmem [shape: f32[32,32], index: 1, kind: input, shape index: {}]
  %s2 = inlined_call_operand.vmem [shape: f32[1,32], index: 2, kind: input, shape index: {}]
  %s3 = inlined_call_operand.vmem [shape: f32[128,16], index: 3, kind: output, shape index: {0}]
  %s4 = inlined_call_operand.vmem [shape: f32[128,16], index: 4, kind: output, shape index: {1}]
  %5 = xla_tuple %s3, %s4
  %s6 = sld [smem:[#allocation0]]
  $region53: #{vanilla_encoder_layer.1} parent=0
    _
  %s8 = ssub.s32 1, %s6
  %s9 = scalar_select 0, %s8, %s6
  loop: start=0, step=1, limit=4
  $region2: #{vanilla_encoder_layer.1} parent=0 // loop_pre_header
    _
  $region3: #{vanilla_encoder_layer.1} parent=0 // loop_header
    %s11 = sphi 0, %s15
    %p12 = scmp.ge.s32.totalorder %s11, 4
    %s21 = sphi 0, %s23
    %s24 = sphi 0, %s21
    %s25 = sphi 0, %s24
    %s41 = sphi 0, %s25
    %s45 = sphi 0, %s45
    %s47 = sphi 0, %s45
    %s48 = sphi 0, %s47
    %s62 = sphi 0, %s48
    %s66 = sphi 0, %s66
    %s68 = sphi 0, %s66
    %s69 = sphi 0, %s68
    %s83 = sphi 0, %s69
    %s89 = sphi 0, %s91
    %s92 = sphi 0, %s89
    %s93 = sphi 0, %s92
    %s109 = sphi 0, %s93
    %s115 = sphi 0, %s117
    %s118 = sphi 0, %s115
    %s119 = sphi 0, %s118
    %s135 = sphi 0, %s119
  $region4: #{vanilla_encoder_layer.1} parent=0 // loop_header_branch
    %14 = sbr.rel (%p12) target = $region8
  $region5: #{vanilla_encoder_layer.1} parent=0 // loop_body
    %s16 = ssub.s32 %s11, 1
    %s17 = ssub.s32 %s11, 2
    %s18 = sadd.s32 %s11, 1
    %s19 = ssub.s32 %s11, %s18
    %p20 = scmp.eq.s32.totalorder %s19, 0
    %s22 = sadd.s32 %s21, 1
    %s23 = scalar_select %p20, %s21, %s22
    %p26 = pneg %p20
    %p27 = scmp.eq.s32.totalorder %s11, 1
    %p28 = por %p26, %p27
    %p29 = scmp.ne.s32.totalorder %s21, %s24
    %p30 = scmp.eq.s32.totalorder %s11, 0
    %p31 = por %p29, %p30
    %p32 = scmp.ne.s32.totalorder %s21, %s24
    %p33 = scmp.eq.s32.totalorder %s16, 1
    %p34 = por %p32, %p33
    %p35 = scmp.ne.s32.totalorder %s24, %s25
    %p36 = scmp.eq.s32.totalorder %s16, 0
    %p37 = por %p35, %p36
    %p38 = scmp.ne.s32.totalorder %s24, %s25
    %p39 = scmp.eq.s32.totalorder %s17, 1
    %p40 = por %p38, %p39
    %p42 = scmp.ne.s32.totalorder %s25, %s41
    %p43 = scmp.eq.s32.totalorder %s17, 0
    %p44 = por %p42, %p43
    %s46 = sadd.s32 %s45, 1
    %p49 = scmp.eq.s32.totalorder %s11, 1
    %p50 = scmp.ne.s32.totalorder %s45, %s47
    %p51 = scmp.eq.s32.totalorder %s11, 0
    %p52 = por %p50, %p51
    %p53 = scmp.ne.s32.totalorder %s45, %s47
    %p54 = scmp.eq.s32.totalorder %s16, 1
    %p55 = por %p53, %p54
    %p56 = scmp.ne.s32.totalorder %s47, %s48
    %p57 = scmp.eq.s32.totalorder %s16, 0
    %p58 = por %p56, %p57
    %p59 = scmp.ne.s32.totalorder %s47, %s48
    %p60 = scmp.eq.s32.totalorder %s17, 1
    %p61 = por %p59, %p60
    %p63 = scmp.ne.s32.totalorder %s48, %s62
    %p64 = scmp.eq.s32.totalorder %s17, 0
    %p65 = por %p63, %p64
    %s67 = sadd.s32 %s66, 1
    %p70 = scmp.eq.s32.totalorder %s11, 1
    %p71 = scmp.ne.s32.totalorder %s66, %s68
    %p72 = scmp.eq.s32.totalorder %s11, 0
    %p73 = por %p71, %p72
    %p74 = scmp.ne.s32.totalorder %s66, %s68
    %p75 = scmp.eq.s32.totalorder %s16, 1
    %p76 = por %p74, %p75
    %p77 = scmp.ne.s32.totalorder %s68, %s69
    %p78 = scmp.eq.s32.totalorder %s16, 0
    %p79 = por %p77, %p78
    %p80 = scmp.ne.s32.totalorder %s68, %s69
    %p81 = scmp.eq.s32.totalorder %s17, 1
    %p82 = por %p80, %p81
    %p84 = scmp.ne.s32.totalorder %s69, %s83
    %p85 = scmp.eq.s32.totalorder %s17, 0
    %p86 = por %p84, %p85
    %s87 = ssub.s32 %s11, %s18
    %p88 = scmp.eq.s32.totalorder %s87, 0
    %s90 = sadd.s32 %s89, 1
    %s91 = scalar_select %p88, %s89, %s90
    %p94 = pneg %p88
    %p95 = scmp.eq.s32.totalorder %s11, 1
    %p96 = por %p94, %p95
    %p97 = scmp.ne.s32.totalorder %s89, %s92
    %p98 = scmp.eq.s32.totalorder %s11, 0
    %p99 = por %p97, %p98
    %p100 = scmp.ne.s32.totalorder %s89, %s92
    %p101 = scmp.eq.s32.totalorder %s16, 1
    %p102 = por %p100, %p101
    %p103 = scmp.ne.s32.totalorder %s92, %s93
    %p104 = scmp.eq.s32.totalorder %s16, 0
    %p105 = por %p103, %p104
    %p106 = scmp.ne.s32.totalorder %s92, %s93
    %p107 = scmp.eq.s32.totalorder %s17, 1
    %p108 = por %p106, %p107
    %p110 = scmp.ne.s32.totalorder %s93, %s109
    %p111 = scmp.eq.s32.totalorder %s17, 0
    %p112 = por %p110, %p111
    %s113 = ssub.s32 %s11, %s18
    %p114 = scmp.eq.s32.totalorder %s113, 0
    %s116 = sadd.s32 %s115, 1
    %s117 = scalar_select %p114, %s115, %s116
    %p120 = pneg %p114
    %p121 = scmp.eq.s32.totalorder %s11, 1
    %p122 = por %p120, %p121
    %p123 = scmp.ne.s32.totalorder %s115, %s118
    %p124 = scmp.eq.s32.totalorder %s11, 0
    %p125 = por %p123, %p124
    %p126 = scmp.ne.s32.totalorder %s115, %s118
    %p127 = scmp.eq.s32.totalorder %s16, 1
    %p128 = por %p126, %p127
    %p129 = scmp.ne.s32.totalorder %s118, %s119
    %p130 = scmp.eq.s32.totalorder %s16, 0
    %p131 = por %p129, %p130
    %p132 = scmp.ne.s32.totalorder %s118, %s119
    %p133 = scmp.eq.s32.totalorder %s17, 1
    %p134 = por %p132, %p133
    %p136 = scmp.ne.s32.totalorder %s119, %s135
    %p137 = scmp.eq.s32.totalorder %s17, 0
    %p138 = por %p136, %p137
    %p139 = scmp.le.s32.totalorder 1, %s11
    %p140 = scmp.lt.s32.totalorder %s11, 3
    %p141 = pnand %p139, %p140
    %p142 = pneg %p141
    // Predicated region
    $region9: #{vanilla_encoder_layer.1} parent=5 // pred_check
      _
    $region10: #{vanilla_encoder_layer.1} parent=5 // pred_check_branch
      %144 = sbr.rel (%p141) target = $region12
    $region11: #{vanilla_encoder_layer.1} parent=5 // pred_region
      %s145 = ssub.s32 %s11, 1
      // Predicated region
      $region13: #{vanilla_encoder_layer.1} parent=11 // pred_check
        %p146 = pneg %p58
      $region14: #{vanilla_encoder_layer.1} parent=11 // pred_check_branch
        %148 = sbr.rel (%p146) target = $region16
      $region15: #{vanilla_encoder_layer.1} parent=11 // pred_region
        _
      $region16: #{vanilla_encoder_layer.1} parent=11 // pred_fallthru
        _
      // Predicated region
      $region17: #{vanilla_encoder_layer.1} parent=11 // pred_check
        %p149 = pneg %p79
      $region18: #{vanilla_encoder_layer.1} parent=11 // pred_check_branch
        %151 = sbr.rel (%p149) target = $region20
      $region19: #{vanilla_encoder_layer.1} parent=11 // pred_region
        _
      $region20: #{vanilla_encoder_layer.1} parent=11 // pred_fallthru
        _
    $region12: #{vanilla_encoder_layer.1} parent=5 // pred_fallthru
      _
    %p152 = scmp.lt.s32.totalorder %s11, 2
    // Predicated region
    $region21: #{vanilla_encoder_layer.1} parent=5 // pred_check
      %p153 = pneg %p152
    $region22: #{vanilla_encoder_layer.1} parent=5 // pred_check_branch
      %155 = sbr.rel (%p153) target = $region24
    $region23: #{vanilla_encoder_layer.1} parent=5 // pred_region
      // Predicated region
      $region25: #{vanilla_encoder_layer.1} parent=23 // pred_check
        %p156 = pneg %p31
      $region26: #{vanilla_encoder_layer.1} parent=23 // pred_check_branch
        %158 = sbr.rel (%p156) target = $region28
      $region27: #{vanilla_encoder_layer.1} parent=23 // pred_region
        %s159 = smul.u32 8, %s11
        %p160 = scmp.lt.s32.totalorder %s159, 15
        %s161 = scalar_select %p160, %s159, 15
        %s162 = smul.addr %s161, 8
        %s163 = scalar_lea.vmem %s0, %s162
        %s164 = smul.u32 8, %s11
      $region28: #{vanilla_encoder_layer.1} parent=23 // pred_fallthru
        _
    $region24: #{vanilla_encoder_layer.1} parent=5 // pred_fallthru
      _
    %p165 = scmp.le.s32.totalorder 1, %s11
    %p166 = scmp.lt.s32.totalorder %s11, 3
    %p167 = pnand %p165, %p166
    %p168 = pneg %p167
    // Predicated region
    $region29: #{vanilla_encoder_layer.1} parent=5 // pred_check
      _
    $region30: #{vanilla_encoder_layer.1} parent=5 // pred_check_branch
      %170 = sbr.rel (%p167) target = $region32
    $region31: #{vanilla_encoder_layer.1} parent=5 // pred_region
      %s171 = ssub.s32 %s11, 1
      %s172 = smul.u32 8, %s16
      %p173 = scmp.lt.s32.totalorder %s172, 15
      %s174 = scalar_select %p173, %s172, 15
      %s175 = smul.addr %s174, 8
      %s176 = scalar_lea.vmem %s0, %s175
      %p177 = pneg %p37
      %p178 = pneg %p34
      %p179 = pneg %p58
      %p180 = pneg %p55
      %p181 = pneg %p79
      %p182 = pneg %p76
      %p183 = pneg %p105
      %p184 = pneg %p102
      %s185 = smul.u32 8, %s16
      %p186 = scmp.lt.s32.totalorder %s185, 15
      %s187 = scalar_select %p186, %s185, 15
      %s188 = smul.addr %s187, 8
      %s189 = scalar_lea.vmem %s3, %s188
      %p190 = pneg %p131
      %p191 = pneg %p128
      %s192 = smul.u32 8, %s16
      %p193 = scmp.lt.s32.totalorder %s192, 15
      %s194 = scalar_select %p193, %s192, 15
      %s195 = smul.addr %s194, 8
      %s196 = scalar_lea.vmem %s4, %s195
      %s197 = smul.u32 8, %s16
      %p198 = scmp.lt.s32.totalorder %s197, 15
      %s199 = scalar_select %p198, %s197, 15
      %s200 = smul.addr %s199, 8
      %s201 = scalar_lea.vmem %s0, %s200
      %s202 = smul.u32 8, %s16
      %s203 = smul.u32 8, %s16
      %p204 = scmp.lt.s32.totalorder %s203, 15
      %s205 = scalar_select %p204, %s203, 15
      %s206 = smul.addr %s205, 8
      %s207 = scalar_lea.vmem %s3, %s206
      %s208 = smul.u32 8, %s16
      %s209 = smul.u32 8, %s16
      %p210 = scmp.lt.s32.totalorder %s209, 15
      %s211 = scalar_select %p210, %s209, 15
      %s212 = smul.addr %s211, 8
      %s213 = scalar_lea.vmem %s4, %s212
      %s214 = smul.u32 8, %s16
      %v215 = vld [vmem:[%s201] sm:$0xff]
      %v216 = vld [vmem:[%s201 + $0x8] sm:$0xff]
      %v217 = vld [vmem:[%s201 + $0x10] sm:$0xff]
      %v218 = vld [vmem:[%s201 + $0x18] sm:$0xff]
      %v219 = vld [vmem:[%s201 + $0x20] sm:$0xff]
      %v220 = vld [vmem:[%s201 + $0x28] sm:$0xff]
      %v221 = vld [vmem:[%s201 + $0x30] sm:$0xff]
      %v222 = vld [vmem:[%s201 + $0x38] sm:$0xff]
      %v223 = vld [vmem:[%s1] sm:$0xff]
      %v224 = vld [vmem:[%s1 + $0x8] sm:$0xff]
      %v225 = vld [vmem:[%s1 + $0x10] sm:$0xff]
      %v226 = vld [vmem:[%s1 + $0x18] sm:$0xff]
      %v227 = vld [vmem:[%s2] sm:$0x1]
      %v229 = vlaneseq
      %v230 = vshrl.u32 %v229, 7
      %v231 = vsub.s32 0, %v230
      %v232 = vrot.slane %v227, %v231
      %vm234 = vcmask 261120
      %v236 = vsel %vm234, %v215, 0
      %v239 = vsel %vm234, %v216, 0
      %v242 = vsel %vm234, %v217, 0
      %v245 = vsel %vm234, %v218, 0
      %v248 = vsel %vm234, %v219, 0
      %v251 = vsel %vm234, %v220, 0
      %v254 = vsel %vm234, %v221, 0
      %v257 = vsel %vm234, %v222, 0
      %v260 = vsel %vm234, %v223, 0
      %v263 = vsel %vm234, %v224, 0
      %v266 = vsel %vm234, %v225, 0
      %v269 = vsel %vm234, %v226, 0
      %271 = vmatprep.subr.mxu0 0.0
      %272 = vmatpush1.xpose.msra.mxu0 0.0
      %273 = vmatprep.subr.mxu0 0.0
      %274 = vmatpush1.xpose.msra.mxu0 0.0
      %275 = vmatprep.subr.mxu0 0.0
      %276 = vmatpush1.xpose.msra.mxu0 0.0
      %277 = vmatprep.subr.mxu0 0.0
      %278 = vmatpush1.xpose.msra.mxu0 0.0
      %279 = vmatprep.subr.mxu0 0.0
      %280 = vmatpush1.xpose.msra.mxu0 0.0
      %281 = vmatprep.subr.mxu0 0.0
      %282 = vmatpush1.xpose.msra.mxu0 0.0
      %283 = vmatprep.subr.mxu0 0.0
      %284 = vmatpush1.xpose.msra.mxu0 0.0
      %285 = vmatprep.subr.mxu0 0.0
      %286 = vmatpush1.xpose.msra.mxu0 0.0
      %287 = vmatprep.subr.mxu0 0.0
      %288 = vmatpush1.xpose.msra.mxu0 0.0
      %289 = vmatprep.subr.mxu0 0.0
      %290 = vmatpush1.xpose.msra.mxu0 0.0
      %291 = vmatprep.subr.mxu0 0.0
      %292 = vmatpush1.xpose.msra.mxu0 0.0
      %293 = vmatprep.subr.mxu0 0.0
      %294 = vmatpush1.xpose.msra.mxu0 0.0
      %295 = vmatprep.subr.mxu0 0.0
      %296 = vmatpush1.xpose.msra.mxu0 %v269
      %297 = vmatprep.subr.mxu0 0.0
      %298 = vmatpush1.xpose.msra.mxu0 %v266
      %299 = vmatprep.subr.mxu0 0.0
      %300 = vmatpush1.xpose.msra.mxu0 %v263
      %301 = vmatprep.subr.mxu0 0.0
      %302 = vmatpush1.xpose.msra.mxu0 %v260
      %303 = vmatprep.subr.mxu0 0.0
      %304 = vmatpush2.xpose.msra.mxu0 0.0
      %305 = vmatprep.subr.mxu0 0.0
      %306 = vmatpush2.xpose.msra.mxu0 0.0
      %307 = vmatprep.subr.mxu0 0.0
      %308 = vmatpush2.xpose.msra.mxu0 0.0
      %309 = vmatprep.subr.mxu0 0.0
      %310 = vmatpush2.xpose.msra.mxu0 0.0
      %311 = vmatprep.subr.mxu0 0.0
      %312 = vmatpush2.xpose.msra.mxu0 0.0
      %313 = vmatprep.subr.mxu0 0.0
      %314 = vmatpush2.xpose.msra.mxu0 0.0
      %315 = vmatprep.subr.mxu0 0.0
      %316 = vmatpush2.xpose.msra.mxu0 0.0
      %317 = vmatprep.subr.mxu0 0.0
      %318 = vmatpush2.xpose.msra.mxu0 0.0
      %319 = vmatprep.subr.mxu0 0.0
      %320 = vmatpush2.xpose.msra.mxu0 0.0
      %321 = vmatprep.subr.mxu0 0.0
      %322 = vmatpush2.xpose.msra.mxu0 0.0
      %323 = vmatprep.subr.mxu0 0.0
      %324 = vmatpush2.xpose.msra.mxu0 0.0
      %325 = vmatprep.subr.mxu0 0.0
      %326 = vmatpush2.xpose.msra.mxu0 0.0
      %327 = vmatprep.subr.mxu0 0.0
      %328 = vmatpush2.xpose.msra.mxu0 0.0
      %329 = vmatprep.subr.mxu0 0.0
      %330 = vmatpush2.xpose.msra.mxu0 0.0
      %331 = vmatprep.subr.mxu0 0.0
      %332 = vmatpush2.xpose.msra.mxu0 0.0
      %333 = vmatprep.subr.mxu0 0.0
      %334 = vmatpush2.xpose.msra.mxu0 0.0
      %335 = vmatprep.mubr.f32.mxu0 0.0
      %336 = vmatmul.mubr.f32.gmra.mxu0 %v236
      %v337 = vpop.f32.mrf.mxu0
      %v338 = vadd.f32 %v232, %v337
      %v339 = vpop.f32.mrf.mxu0
      %340 = vmatprep.mubr.f32.mxu0 0.0
      %341 = vmatmul.mubr.f32.gmra.mxu0 %v239
      %v342 = vpop.f32.mrf.mxu0
      %v343 = vadd.f32 %v232, %v342
      %v344 = vpop.f32.mrf.mxu0
      %345 = vmatprep.mubr.f32.mxu0 0.0
      %346 = vmatmul.mubr.f32.gmra.mxu0 %v242
      %v347 = vpop.f32.mrf.mxu0
      %v348 = vadd.f32 %v232, %v347
      %v349 = vpop.f32.mrf.mxu0
      %350 = vmatprep.mubr.f32.mxu0 0.0
      %351 = vmatmul.mubr.f32.gmra.mxu0 %v245
      %v352 = vpop.f32.mrf.mxu0
      %v353 = vadd.f32 %v232, %v352
      %v354 = vpop.f32.mrf.mxu0
      %355 = vmatprep.mubr.f32.mxu0 0.0
      %356 = vmatmul.mubr.f32.gmra.mxu0 %v248
      %v357 = vpop.f32.mrf.mxu0
      %v358 = vadd.f32 %v232, %v357
      %v359 = vpop.f32.mrf.mxu0
      %360 = vmatprep.mubr.f32.mxu0 0.0
      %361 = vmatmul.mubr.f32.gmra.mxu0 %v251
      %v362 = vpop.f32.mrf.mxu0
      %v363 = vadd.f32 %v232, %v362
      %v364 = vpop.f32.mrf.mxu0
      %365 = vmatprep.mubr.f32.mxu0 0.0
      %366 = vmatmul.mubr.f32.gmra.mxu0 %v254
      %v367 = vpop.f32.mrf.mxu0
      %v368 = vadd.f32 %v232, %v367
      %v369 = vpop.f32.mrf.mxu0
      %370 = vmatprep.mubr.f32.mxu0 0.0
      %371 = vmatmul.mubr.f32.gmra.mxu0 %v257
      %v372 = vpop.f32.mrf.mxu0
      %v373 = vadd.f32 %v232, %v372
      %v374 = vpop.f32.mrf.mxu0
      %375 = vdwg.mxu0
      %vm376 = vcmask 130048
      %377 = vst.msk [vmem:[%s207] sm:$0xff] %vm376, %v338
      %378 = vst.msk [vmem:[%s207 + $0x8] sm:$0xff] %vm376, %v343
      %379 = vst.msk [vmem:[%s207 + $0x10] sm:$0xff] %vm376, %v348
      %380 = vst.msk [vmem:[%s207 + $0x18] sm:$0xff] %vm376, %v353
      %381 = vst.msk [vmem:[%s207 + $0x20] sm:$0xff] %vm376, %v358
      %382 = vst.msk [vmem:[%s207 + $0x28] sm:$0xff] %vm376, %v363
      %383 = vst.msk [vmem:[%s207 + $0x30] sm:$0xff] %vm376, %v368
      %384 = vst.msk [vmem:[%s207 + $0x38] sm:$0xff] %vm376, %v373
      %393 = vrot.lane.b32.xlu0 %v338, 112
      %v394 = vpop.permute.xlu0 %393
      %395 = vrot.lane.b32.xlu0 %v343, 112
      %v396 = vpop.permute.xlu0 %395
      %397 = vrot.lane.b32.xlu0 %v348, 112
      %v398 = vpop.permute.xlu0 %397
      %399 = vrot.lane.b32.xlu0 %v353, 112
      %v400 = vpop.permute.xlu0 %399
      %401 = vrot.lane.b32.xlu0 %v358, 112
      %v402 = vpop.permute.xlu0 %401
      %403 = vrot.lane.b32.xlu0 %v363, 112
      %v404 = vpop.permute.xlu0 %403
      %405 = vrot.lane.b32.xlu0 %v368, 112
      %v406 = vpop.permute.xlu0 %405
      %407 = vrot.lane.b32.xlu0 %v373, 112
      %v408 = vpop.permute.xlu0 %407
      %417 = vst.msk [vmem:[%s213] sm:$0xff] %vm376, %v394
      %418 = vst.msk [vmem:[%s213 + $0x8] sm:$0xff] %vm376, %v396
      %419 = vst.msk [vmem:[%s213 + $0x10] sm:$0xff] %vm376, %v398
      %420 = vst.msk [vmem:[%s213 + $0x18] sm:$0xff] %vm376, %v400
      %421 = vst.msk [vmem:[%s213 + $0x20] sm:$0xff] %vm376, %v402
      %422 = vst.msk [vmem:[%s213 + $0x28] sm:$0xff] %vm376, %v404
      %423 = vst.msk [vmem:[%s213 + $0x30] sm:$0xff] %vm376, %v406
      %424 = vst.msk [vmem:[%s213 + $0x38] sm:$0xff] %vm376, %v408
      %s425 = smul.u32 8, %s16
      %p426 = scmp.lt.s32.totalorder %s425, 15
      %s427 = scalar_select %p426, %s425, 15
      %s428 = smul.addr %s427, 8
      %s429 = scalar_lea.vmem %s3, %s428
      %s430 = smul.u32 8, %s16
      %p431 = scmp.lt.s32.totalorder %s430, 15
      %s432 = scalar_select %p431, %s430, 15
      %s433 = smul.addr %s432, 8
      %s434 = scalar_lea.vmem %s4, %s433
      // Predicated region
      $region33: #{vanilla_encoder_layer.1} parent=31 // pred_check
        %p435 = pneg %p102
      $region34: #{vanilla_encoder_layer.1} parent=31 // pred_check_branch
        %437 = sbr.rel (%p435) target = $region36
      $region35: #{vanilla_encoder_layer.1} parent=31 // pred_region
        %s438 = smul.u32 8, %s16
      $region36: #{vanilla_encoder_layer.1} parent=31 // pred_fallthru
        _
      // Predicated region
      $region37: #{vanilla_encoder_layer.1} parent=31 // pred_check
        %p439 = pneg %p128
      $region38: #{vanilla_encoder_layer.1} parent=31 // pred_check_branch
        %441 = sbr.rel (%p439) target = $region40
      $region39: #{vanilla_encoder_layer.1} parent=31 // pred_region
        %s442 = smul.u32 8, %s16
      $region40: #{vanilla_encoder_layer.1} parent=31 // pred_fallthru
        _
    $region32: #{vanilla_encoder_layer.1} parent=5 // pred_fallthru
      _
    %p443 = scmp.le.s32.totalorder 2, %s11
    // Predicated region
    $region41: #{vanilla_encoder_layer.1} parent=5 // pred_check
      %p444 = pneg %p443
    $region42: #{vanilla_encoder_layer.1} parent=5 // pred_check_branch
      %446 = sbr.rel (%p444) target = $region44
    $region43: #{vanilla_encoder_layer.1} parent=5 // pred_region
      %s447 = ssub.s32 %s11, 2
      // Predicated region
      $region45: #{vanilla_encoder_layer.1} parent=43 // pred_check
        %p448 = pneg %p108
      $region46: #{vanilla_encoder_layer.1} parent=43 // pred_check_branch
        %450 = sbr.rel (%p448) target = $region48
      $region47: #{vanilla_encoder_layer.1} parent=43 // pred_region
        %s451 = smul.u32 8, %s17
        %p452 = scmp.lt.s32.totalorder %s451, 15
        %s453 = scalar_select %p452, %s451, 15
        %s454 = smul.addr %s453, 8
        %s455 = scalar_lea.vmem %s3, %s454
      $region48: #{vanilla_encoder_layer.1} parent=43 // pred_fallthru
        _
      // Predicated region
      $region49: #{vanilla_encoder_layer.1} parent=43 // pred_check
        %p456 = pneg %p134
      $region50: #{vanilla_encoder_layer.1} parent=43 // pred_check_branch
        %458 = sbr.rel (%p456) target = $region52
      $region51: #{vanilla_encoder_layer.1} parent=43 // pred_region
        %s459 = smul.u32 8, %s17
        %p460 = scmp.lt.s32.totalorder %s459, 15
        %s461 = scalar_select %p460, %s459, 15
        %s462 = smul.addr %s461, 8
        %s463 = scalar_lea.vmem %s4, %s462
      $region52: #{vanilla_encoder_layer.1} parent=43 // pred_fallthru
        _
    $region44: #{vanilla_encoder_layer.1} parent=5 // pred_fallthru
      _
  $region6: #{vanilla_encoder_layer.1} parent=0 // loop_footer
    %s15 = sadd.s32 1, %s11
  $region7: #{vanilla_encoder_layer.1} parent=0 // loop_footer_branch
    %10 = sbr.rel target = $region3
  $region8: #{vanilla_encoder_layer.1} parent=0 // loop_exit
    _

</llo_original>
